<compile_context>
chip_gen: v5e
topology: v5e:2x2
jax: 0.10.0
libtpu: 0.0.40
codegen_flags: <defaults>
</compile_context>

<pallas_src>
import math

import jax
import jax.numpy as jnp
from jax import lax
from jax.experimental import pallas as pl
from jax.experimental.pallas import tpu as pltpu

LANE = 128
SUBLANE = 8


def _round_up(x: int, m: int) -> int:
    return (x + m - 1) // m * m


def _choose_tb(batch: int, block_b: int) -> int:
    """Batch tile: full batch when small (block == array dims is always legal),
    otherwise a lane-aligned tile sized for >= 4 grid steps (v7x megacore)."""
    if batch < 2 * LANE:
        return batch
    tb = _round_up(pl.cdiv(batch, 4), LANE)
    return max(LANE, min(block_b, tb))


def _mlp_kernel(x_ref, w1_ref, b1_ref, w2_ref, b2_ref, w3_ref, b3_ref, o_ref):
    # Cast obs to bf16 in-kernel (hidden under DMA); matmuls accumulate in f32.
    x = x_ref[...].astype(jnp.bfloat16)                              # [tb, obs_dim]
    # Layer 1: Linear(obs_dim -> hid_pad) + Tanh (bias-add / tanh in f32).
    h = jnp.dot(x, w1_ref[...], preferred_element_type=jnp.float32) + b1_ref[...]
    h = jnp.tanh(h).astype(jnp.bfloat16)                             # [tb, hid_pad]
    # Layer 2: Linear(hid_pad -> hid_pad) + Tanh.
    h = jnp.dot(h, w2_ref[...], preferred_element_type=jnp.float32) + b2_ref[...]
    h = jnp.tanh(h).astype(jnp.bfloat16)                             # [tb, hid_pad]
    # Layer 3, feature-major output: contract the hidden dim of both operands
    # (w3 [act_pad, hid_pad] . h [tb, hid_pad]^T) -> [act_pad, tb].
    out_t = lax.dot_general(
        w3_ref[...], h,
        dimension_numbers=(((1,), (1,)), ((), ())),
        preferred_element_type=jnp.float32,
    ) + b3_ref[...]                                                  # [act_pad, tb]
    o_ref[...] = out_t.astype(o_ref.dtype)


def simple_mlp_forward_feature_major(obs, params, *, block_b=1024):
    """obs: [B, obs_dim] float32.  Returns the compact feature-major output
    [act_pad, B] float32 (act dim zero-padded up to a multiple of 8)."""
    w1, b1, w2, b2, w3, b3 = (
        params["w1"], params["b1"], params["w2"],
        params["b2"], params["w3"], params["b3"],
    )
    B, obs_dim = obs.shape
    hid_pad = w1.shape[1]
    act_pad = w3.shape[0]

    tb = _choose_tb(B, block_b)
    grid = (pl.cdiv(B, tb),)
    const = lambda i: (0, 0)          # weights / biases stay VMEM-resident

    flops = 2 * B * (obs_dim * hid_pad + hid_pad * hid_pad + hid_pad * act_pad)
    bytes_accessed = (
        obs.size * obs.dtype.itemsize
        + sum(int(a.size) * a.dtype.itemsize for a in (w1, b1, w2, b2, w3, b3))
        + act_pad * B * 4
    )
    cost = pl.CostEstimate(
        flops=int(flops),
        transcendentals=int(2 * B * hid_pad),
        bytes_accessed=int(bytes_accessed),
    )

    return pl.pallas_call(
        _mlp_kernel,
        out_shape=jax.ShapeDtypeStruct((act_pad, B), jnp.float32),
        grid=grid,
        in_specs=[
            pl.BlockSpec((tb, obs_dim), lambda i: (i, 0)),
            pl.BlockSpec(w1.shape, const), pl.BlockSpec(b1.shape, const),
            pl.BlockSpec(w2.shape, const), pl.BlockSpec(b2.shape, const),
            pl.BlockSpec(w3.shape, const), pl.BlockSpec(b3.shape, const),
        ],
        out_specs=pl.BlockSpec((act_pad, tb), lambda i: (0, i)),
        compiler_params=pltpu.CompilerParams(
            dimension_semantics=("parallel",),   # lets v7x shard batch tiles over both TCs
        ),
        cost_estimate=cost,
    )(obs, w1, b1, w2, b2, w3, b3)


def simple_mlp_forward(obs, params, act_dim, *, block_b=1024):
    """PyTorch-shaped result [B, act_dim] f32.  The compaction now touches only
    the compact [act_pad, B] kernel output (~32 B/row), not a 512 B/row padded
    array; bandwidth-sensitive consumers can use the feature-major form directly."""
    out_t = simple_mlp_forward_feature_major(obs, params, block_b=block_b)
    return out_t[:act_dim, :].T


def init_params(key, obs_dim, act_dim, hidden_dim):
    """Xavier-uniform weights and zero biases, matching SimpleMLP._init_weights.
    Returns (kernel_params, reference_params)."""
    def xavier(k, fan_in, fan_out):
        bound = math.sqrt(6.0 / (fan_in + fan_out))
        return jax.random.uniform(
            k, (fan_in, fan_out), jnp.float32, minval=-bound, maxval=bound
        )

    k1, k2, k3 = jax.random.split(key, 3)
    w1 = xavier(k1, obs_dim, hidden_dim)        # [in, out]
    w2 = xavier(k2, hidden_dim, hidden_dim)     # [in, out]
    w3 = xavier(k3, hidden_dim, act_dim)        # [in, out]

    # Exact f32 reference params (PyTorch semantics, [in, out] layout).
    ref_params = {
        "w1": w1, "b1": jnp.zeros((1, hidden_dim), jnp.float32),
        "w2": w2, "b2": jnp.zeros((1, hidden_dim), jnp.float32),
        "w3": w3, "b3": jnp.zeros((1, act_dim), jnp.float32),
    }

    # Kernel params: hidden dim zero-padded to a lane (128) so bias-add / tanh /
    # repack are lane-dense; last layer stored feature-major [act_pad, hid_pad]
    # with act_dim zero-padded to a sublane (8).  Padding is exact (tanh(0)=0).
    hid_pad = _round_up(hidden_dim, LANE)
    act_pad = _round_up(max(act_dim, 1), SUBLANE)
    w1p = jnp.zeros((obs_dim, hid_pad), jnp.float32).at[:, :hidden_dim].set(w1)
    w2p = jnp.zeros((hid_pad, hid_pad), jnp.float32).at[:hidden_dim, :hidden_dim].set(w2)
    w3p = jnp.zeros((act_pad, hid_pad), jnp.float32).at[:act_dim, :hidden_dim].set(w3.T)
    kernel_params = {
        "w1": w1p.astype(jnp.bfloat16),
        "b1": jnp.zeros((1, hid_pad), jnp.float32),
        "w2": w2p.astype(jnp.bfloat16),
        "b2": jnp.zeros((1, hid_pad), jnp.float32),
        "w3": w3p.astype(jnp.bfloat16),
        "b3": jnp.zeros((act_pad, 1), jnp.float32),
    }
    return kernel_params, ref_params


def reference_forward(obs, params):
    h = jnp.tanh(obs @ params["w1"] + params["b1"])
    h = jnp.tanh(h @ params["w2"] + params["b2"])
    return h @ params["w3"] + params["b3"]


if __name__ == "__main__":
    # HalfCheetah-like dims, kept small.
    obs_dim, act_dim, hidden_dim = 17, 6, 32

    key = jax.random.PRNGKey(0)
    k_obs, k_obs2, k_params = jax.random.split(key, 3)
    kernel_params, ref_params = init_params(k_params, obs_dim, act_dim, hidden_dim)

    # Single-block path (block shapes == full array dims).
    batch = 8
    obs = jax.random.normal(k_obs, (batch, obs_dim), dtype=jnp.float32)
    out = jax.block_until_ready(simple_mlp_forward(obs, kernel_params, act_dim))
    ref = reference_forward(obs, ref_params)
    assert out.shape == (batch, act_dim)
    assert jnp.allclose(out, ref, atol=2e-2, rtol=2e-2), "mismatch vs JAX reference (B=8)"

    # Multi-block path: lane-aligned batch tiles, 3 grid steps.
    batch2 = 384
    obs2 = jax.random.normal(k_obs2, (batch2, obs_dim), dtype=jnp.float32)
    out2 = jax.block_until_ready(simple_mlp_forward(obs2, kernel_params, act_dim))
    ref2 = reference_forward(obs2, ref_params)
    assert out2.shape == (batch2, act_dim)
    assert jnp.allclose(out2, ref2, atol=2e-2, rtol=2e-2), "mismatch vs JAX reference (B=384)"

    print("KERNEL_OK")
</pallas_src>

<mosaic_0001>
module attributes {stable_mosaic.version = 11 : i64} {
  func.func @_mlp_kernel(%arg0: i32, %arg1: memref<8x17xf32, #tpu.memory_space<vmem>>, %arg2: memref<17x128xbf16, #tpu.memory_space<vmem>>, %arg3: memref<1x128xf32, #tpu.memory_space<vmem>>, %arg4: memref<128x128xbf16, #tpu.memory_space<vmem>>, %arg5: memref<1x128xf32, #tpu.memory_space<vmem>>, %arg6: memref<8x128xbf16, #tpu.memory_space<vmem>>, %arg7: memref<8x1xf32, #tpu.memory_space<vmem>>, %arg8: memref<8x8xf32, #tpu.memory_space<vmem>>) attributes {dimension_semantics = [#tpu.dimension_semantics<parallel>], iteration_bounds = array<i64: 1>, scalar_prefetch = 0 : i64, scratch_operands = 0 : i64, tpu.core_type = #tpu.core_type<tc>, window_params = [{transform_indices = @transform_0, window_bounds = array<i64: 8, 17>}, {pipeline_mode = #tpu.pipeline_mode<synchronous>, transform_indices = @transform_1, window_bounds = array<i64: 17, 128>}, {pipeline_mode = #tpu.pipeline_mode<synchronous>, transform_indices = @transform_2, window_bounds = array<i64: 1, 128>}, {pipeline_mode = #tpu.pipeline_mode<synchronous>, transform_indices = @transform_3, window_bounds = array<i64: 128, 128>}, {pipeline_mode = #tpu.pipeline_mode<synchronous>, transform_indices = @transform_4, window_bounds = array<i64: 1, 128>}, {pipeline_mode = #tpu.pipeline_mode<synchronous>, transform_indices = @transform_5, window_bounds = array<i64: 8, 128>}, {pipeline_mode = #tpu.pipeline_mode<synchronous>, transform_indices = @transform_6, window_bounds = array<i64: 8, 1>}, {transform_indices = @transform_7, window_bounds = array<i64: 8, 8>}]} {
    %c0 = arith.constant 0 : index
    %c0_0 = arith.constant 0 : index
    %0 = vector.load %arg1[%c0, %c0_0] : memref<8x17xf32, #tpu.memory_space<vmem>>, vector<8x17xf32>
    %1 = arith.truncf %0 : vector<8x17xf32> to vector<8x17xbf16>
    %c0_1 = arith.constant 0 : index
    %c0_2 = arith.constant 0 : index
    %2 = vector.load %arg2[%c0_1, %c0_2] : memref<17x128xbf16, #tpu.memory_space<vmem>>, vector<17x128xbf16>
    %cst = arith.constant dense<0.000000e+00> : vector<8x128xf32>
    %3 = tpu.matmul %1, %2, %cst {dimension_numbers = #tpu.dot_dimension_numbers<[1], [0], [0], [1], [0, 0, 1, 1], [], []>} : vector<8x17xbf16>, vector<17x128xbf16>, vector<8x128xf32> -> vector<8x128xf32>
    %c0_3 = arith.constant 0 : index
    %c0_4 = arith.constant 0 : index
    %4 = vector.load %arg3[%c0_3, %c0_4] : memref<1x128xf32, #tpu.memory_space<vmem>>, vector<1x128xf32>
    %5 = vector.broadcast %4 : vector<1x128xf32> to vector<8x128xf32>
    %6 = arith.addf %3, %5 : vector<8x128xf32>
    %7 = math.tanh %6 : vector<8x128xf32>
    %8 = arith.truncf %7 : vector<8x128xf32> to vector<8x128xbf16>
    %c0_5 = arith.constant 0 : index
    %c0_6 = arith.constant 0 : index
    %9 = vector.load %arg4[%c0_5, %c0_6] : memref<128x128xbf16, #tpu.memory_space<vmem>>, vector<128x128xbf16>
    %cst_7 = arith.constant dense<0.000000e+00> : vector<8x128xf32>
    %10 = tpu.matmul %8, %9, %cst_7 {dimension_numbers = #tpu.dot_dimension_numbers<[1], [0], [0], [1], [0, 0, 1, 1], [], []>} : vector<8x128xbf16>, vector<128x128xbf16>, vector<8x128xf32> -> vector<8x128xf32>
    %c0_8 = arith.constant 0 : index
    %c0_9 = arith.constant 0 : index
    %11 = vector.load %arg5[%c0_8, %c0_9] : memref<1x128xf32, #tpu.memory_space<vmem>>, vector<1x128xf32>
    %12 = vector.broadcast %11 : vector<1x128xf32> to vector<8x128xf32>
    %13 = arith.addf %10, %12 : vector<8x128xf32>
    %14 = math.tanh %13 : vector<8x128xf32>
    %15 = arith.truncf %14 : vector<8x128xf32> to vector<8x128xbf16>
    %c0_10 = arith.constant 0 : index
    %c0_11 = arith.constant 0 : index
    %16 = vector.load %arg6[%c0_10, %c0_11] : memref<8x128xbf16, #tpu.memory_space<vmem>>, vector<8x128xbf16>
    %cst_12 = arith.constant dense<0.000000e+00> : vector<8x8xf32>
    %17 = tpu.matmul %16, %15, %cst_12 {dimension_numbers = #tpu.dot_dimension_numbers<[1], [1], [0], [0], [0, 0, 1, 0], [], []>} : vector<8x128xbf16>, vector<8x128xbf16>, vector<8x8xf32> -> vector<8x8xf32>
    %c0_13 = arith.constant 0 : index
    %c0_14 = arith.constant 0 : index
    %18 = vector.load %arg7[%c0_13, %c0_14] : memref<8x1xf32, #tpu.memory_space<vmem>>, vector<8x1xf32>
    %19 = vector.broadcast %18 : vector<8x1xf32> to vector<8x8xf32>
    %20 = arith.addf %17, %19 : vector<8x8xf32>
    %c0_15 = arith.constant 0 : index
    %c0_16 = arith.constant 0 : index
    %21 = vector.load %arg8[%c0_15, %c0_16] : memref<8x8xf32, #tpu.memory_space<vmem>>, vector<8x8xf32>
    tpu.vector_store %arg8[%c0_15, %c0_16], %20 {strides = array<i32>} : memref<8x8xf32, #tpu.memory_space<vmem>>, vector<8x8xf32>,
    return
  }
  func.func @transform_0(%arg0: i32) -> (i32, i32) {
    %c0_i32 = arith.constant 0 : i32
    %c0_i32_0 = arith.constant 0 : i32
    return %arg0, %c0_i32 : i32, i32
  }
  func.func @transform_1(%arg0: i32) -> (i32, i32) {
    %c0_i32 = arith.constant 0 : i32
    %c0_i32_0 = arith.constant 0 : i32
    %c0_i32_1 = arith.constant 0 : i32
    return %c0_i32, %c0_i32_0 : i32, i32
  }
  func.func @transform_2(%arg0: i32) -> (i32, i32) {
    %c0_i32 = arith.constant 0 : i32
    %c0_i32_0 = arith.constant 0 : i32
    %c0_i32_1 = arith.constant 0 : i32
    return %c0_i32, %c0_i32_0 : i32, i32
  }
  func.func @transform_3(%arg0: i32) -> (i32, i32) {
    %c0_i32 = arith.constant 0 : i32
    %c0_i32_0 = arith.constant 0 : i32
    %c0_i32_1 = arith.constant 0 : i32
    return %c0_i32, %c0_i32_0 : i32, i32
  }
  func.func @transform_4(%arg0: i32) -> (i32, i32) {
    %c0_i32 = arith.constant 0 : i32
    %c0_i32_0 = arith.constant 0 : i32
    %c0_i32_1 = arith.constant 0 : i32
    return %c0_i32, %c0_i32_0 : i32, i32
  }
  func.func @transform_5(%arg0: i32) -> (i32, i32) {
    %c0_i32 = arith.constant 0 : i32
    %c0_i32_0 = arith.constant 0 : i32
    %c0_i32_1 = arith.constant 0 : i32
    return %c0_i32, %c0_i32_0 : i32, i32
  }
  func.func @transform_6(%arg0: i32) -> (i32, i32) {
    %c0_i32 = arith.constant 0 : i32
    %c0_i32_0 = arith.constant 0 : i32
    %c0_i32_1 = arith.constant 0 : i32
    return %c0_i32, %c0_i32_0 : i32, i32
  }
  func.func @transform_7(%arg0: i32) -> (i32, i32) {
    %c0_i32 = arith.constant 0 : i32
    %c0_i32_0 = arith.constant 0 : i32
    return %c0_i32, %arg0 : i32, i32
  }
}

</mosaic_0001>

<llo_original>
// kernel: tpu_custom_call.1
$region0: #{tpu_custom_call.1}
  #allocation0 [shape = 'u32[]', space=smem, size = 0x4, offset = 0x4, fixed_abs, tag = 'smem constant byte address 0x4 - core index']
  #allocation1 [shape = 'u32[72,128]{1,0:T(1,128)}', space=vmem, size = 0x9000, scoped, tag = 'internal scratch']
  %s0 = inlined_call_operand.vmem [shape: f32[8,17], index: 0, kind: input, shape index: {}]
  %s1 = inlined_call_operand.hbm [shape: bf16[17,128], index: 1, kind: input, shape index: {}]
  %s2 = inlined_call_operand.hbm [shape: f32[1,128], index: 2, kind: input, shape index: {}]
  %s3 = inlined_call_operand.hbm [shape: bf16[128,128], index: 3, kind: input, shape index: {}]
  %s4 = inlined_call_operand.hbm [shape: f32[1,128], index: 4, kind: input, shape index: {}]
  %s5 = inlined_call_operand.vmem [shape: bf16[8,128], index: 5, kind: input, shape index: {}]
  %s6 = inlined_call_operand.vmem [shape: f32[8,1], index: 6, kind: input, shape index: {}]
  %s7 = inlined_call_operand.hbm [shape: f32[8,8], index: 7, kind: output, shape index: {}]
  %s8 = sld [smem:[#allocation0]]
  $region54: #{tpu_custom_call.1} parent=0
    _
  %s10 = ssub.s32 1, %s8
  %s11 = scalar_select 0, %s10, %s8
  $region1: #{tpu_custom_call.1} parent=0
    #allocation2 [shape = 'u8[6144]{0}', space=vmem, size = 0x1800, scoped, tag = 'input window, operand 1, single buffered']
    #allocation3 [shape = 's32[1]{0}', space=sflag, size = 0x4, scoped, tag = 'scoped memory for tpu_custom_call.1']
    #allocation4 [shape = 's32[1]{0}', space=sflag, size = 0x4, scoped, tag = 'scoped memory for tpu_custom_call.1']
    #allocation5 [shape = 'u8[512]{0}', space=vmem, size = 0x400, scoped, tag = 'input window, operand 2, single buffered']
    #allocation6 [shape = 's32[1]{0}', space=sflag, size = 0x4, scoped, tag = 'scoped memory for tpu_custom_call.1']
    #allocation7 [shape = 'u8[32768]{0}', space=vmem, size = 0x8000, scoped, tag = 'input window, operand 3, single buffered']
    #allocation8 [shape = 'u8[512]{0}', space=vmem, size = 0x400, scoped, tag = 'input window, operand 4, single buffered']
    #allocation9 [shape = 's32[1]{0}', space=sflag, size = 0x4, scoped, tag = 'scoped memory for tpu_custom_call.1']
    #allocation10 [shape = 'u8[4096]{0}', space=vmem, size = 0x1000, scoped, tag = 'output window, operand 0, single buffered']
    %12 = vsyncpa [#allocation3], 0
    %13 = vsyncpa [#allocation6], 0
    %14 = vsyncpa [#allocation9], 0
    %15 = vsyncpa [#allocation4], 0
    // Predicated region
    $region2: #{tpu_custom_call.1} parent=1 // pred_check
      _
    $region3: #{tpu_custom_call.1} parent=1 // pred_check_branch
      %17 = sbr.rel (0) target = $region5
    $region4: #{tpu_custom_call.1} parent=1 // pred_region
      _
    $region5: #{tpu_custom_call.1} parent=1 // pred_fallthru
      _
    // Predicated region
    $region6: #{tpu_custom_call.1} parent=1 // pred_check
      _
    $region7: #{tpu_custom_call.1} parent=1 // pred_check_branch
      %19 = sbr.rel (0) target = $region9
    $region8: #{tpu_custom_call.1} parent=1 // pred_region
      %21 = vsyncadd [#allocation3], 0
      %s22 = sshll.u32 %s1, 4
      %s23 = int_to_ptr.hbm [resolvable:$true] %s22
      %s24 = sshll.u32 [#allocation2], 4
      %s25 = int_to_ptr.vmem [resolvable:$true] %s24
      %30 = dma.hbm_to_vmem [thread:$0]  %s23, 192, %s25, [#allocation3], 64, 64, 4
    $region9: #{tpu_custom_call.1} parent=1 // pred_fallthru
      _
    // Predicated region
    $region10: #{tpu_custom_call.1} parent=1 // pred_check
      _
    $region11: #{tpu_custom_call.1} parent=1 // pred_check_branch
      %32 = sbr.rel (0) target = $region13
    $region12: #{tpu_custom_call.1} parent=1 // pred_region
      %34 = vsyncadd [#allocation6], 0
      %s36 = sshll.u32 %s2, 4
      %s37 = int_to_ptr.hbm [resolvable:$true] %s36
      %s38 = sshll.u32 [#allocation5], 4
      %s39 = int_to_ptr.vmem [resolvable:$true] %s38
      %41 = dma.hbm_to_vmem [thread:$0]  %s37, 16, %s39, [#allocation6]
    $region13: #{tpu_custom_call.1} parent=1 // pred_fallthru
      _
    // Predicated region
    $region14: #{tpu_custom_call.1} parent=1 // pred_check
      _
    $region15: #{tpu_custom_call.1} parent=1 // pred_check_branch
      %43 = sbr.rel (0) target = $region17
    $region16: #{tpu_custom_call.1} parent=1 // pred_region
      %45 = vsyncadd [#allocation6], 0
      %s46 = sshll.u32 %s3, 4
      %s47 = int_to_ptr.hbm [resolvable:$true] %s46
      %s48 = sshll.u32 [#allocation7], 4
      %s49 = int_to_ptr.vmem [resolvable:$true] %s48
      %54 = dma.hbm_to_vmem [thread:$0]  %s47, 1024, %s49, [#allocation6], 64, 64, 4
    $region17: #{tpu_custom_call.1} parent=1 // pred_fallthru
      _
    // Predicated region
    $region18: #{tpu_custom_call.1} parent=1 // pred_check
      _
    $region19: #{tpu_custom_call.1} parent=1 // pred_check_branch
      %56 = sbr.rel (0) target = $region21
    $region20: #{tpu_custom_call.1} parent=1 // pred_region
      %58 = vsyncadd [#allocation9], 0
      %s60 = sshll.u32 %s4, 4
      %s61 = int_to_ptr.hbm [resolvable:$true] %s60
      %s62 = sshll.u32 [#allocation8], 4
      %s63 = int_to_ptr.vmem [resolvable:$true] %s62
      %65 = dma.hbm_to_vmem [thread:$0]  %s61, 16, %s63, [#allocation9]
    $region21: #{tpu_custom_call.1} parent=1 // pred_fallthru
      _
    // Predicated region
    $region22: #{tpu_custom_call.1} parent=1 // pred_check
      _
    $region23: #{tpu_custom_call.1} parent=1 // pred_check_branch
      %67 = sbr.rel (0) target = $region25
    $region24: #{tpu_custom_call.1} parent=1 // pred_region
      _
    $region25: #{tpu_custom_call.1} parent=1 // pred_fallthru
      _
    // Predicated region
    $region26: #{tpu_custom_call.1} parent=1 // pred_check
      _
    $region27: #{tpu_custom_call.1} parent=1 // pred_check_branch
      %69 = sbr.rel (0) target = $region29
    $region28: #{tpu_custom_call.1} parent=1 // pred_region
      _
    $region29: #{tpu_custom_call.1} parent=1 // pred_fallthru
      _
    // Predicated region
    $region30: #{tpu_custom_call.1} parent=1 // pred_check
      _
    $region31: #{tpu_custom_call.1} parent=1 // pred_check_branch
      %71 = sbr.rel (0) target = $region33
    $region32: #{tpu_custom_call.1} parent=1 // pred_region
      %73 = dma.done [#allocation3], 192
    $region33: #{tpu_custom_call.1} parent=1 // pred_fallthru
      _
    // Predicated region
    $region34: #{tpu_custom_call.1} parent=1 // pred_check
      _
    $region35: #{tpu_custom_call.1} parent=1 // pred_check_branch
      %75 = sbr.rel (0) target = $region37
    $region36: #{tpu_custom_call.1} parent=1 // pred_region
      %77 = dma.done [#allocation6], 16
    $region37: #{tpu_custom_call.1} parent=1 // pred_fallthru
      _
    // Predicated region
    $region38: #{tpu_custom_call.1} parent=1 // pred_check
      _
    $region39: #{tpu_custom_call.1} parent=1 // pred_check_branch
      %79 = sbr.rel (0) target = $region41
    $region40: #{tpu_custom_call.1} parent=1 // pred_region
      %81 = dma.done [#allocation6], 1024
    $region41: #{tpu_custom_call.1} parent=1 // pred_fallthru
      _
    // Predicated region
    $region42: #{tpu_custom_call.1} parent=1 // pred_check
      _
    $region43: #{tpu_custom_call.1} parent=1 // pred_check_branch
      %83 = sbr.rel (0) target = $region45
    $region44: #{tpu_custom_call.1} parent=1 // pred_region
      %85 = dma.done [#allocation9], 16
    $region45: #{tpu_custom_call.1} parent=1 // pred_fallthru
      _
    %v87 = vld [vmem:[%s0] sm:$0xff]
    %v88 = vpack.c.bf16 %v87, %v87
    %v89 = vld [vmem:[#allocation2] sm:$0xf]
    %v90 = vld [vmem:[#allocation2 + $0x4] sm:$0xf]
    %v91 = vld [vmem:[#allocation2 + $0x8] sm:$0x1]
    %v92 = vld [vmem:[#allocation5] sm:$0x1]
    %v94 = vperm.slane %v92, 0
    %v99 = vunpack.c.l.b16 %v89
    %v100 = vunpack.c.l.b16 %v90
    %v101 = vunpack.c.l.b16 %v91
    %v102 = vpack.c.b16 %v100, %v99
    %v103 = vpack.c.b16 %v101, %v101
    %vm105 = vcmask 138240
    %v107 = vsel %vm105, %v88, 0
    %vm109 = vcmask 1040384
    %v110 = vsel 0, 4294967295, 65535
    %v111 = vsel %vm109, %v110, 0
    %v113 = vand.u32 %v103, %v111
    %115 = vmatpush.bf16.msra.mxu0 0
    %116 = vmatpush.bf16.msra.mxu0 0
    %117 = vmatpush.bf16.msra.mxu0 0
    %118 = vmatpush.bf16.msra.mxu0 0
    %119 = vmatpush.bf16.msra.mxu0 0
    %120 = vmatpush.bf16.msra.mxu0 0
    %121 = vmatpush.bf16.msra.mxu0 %v113
    %122 = vmatpush.bf16.msra.mxu0 %v102
    %123 = vmatmul.bf16.gmra.mxu0 %v107
    %v124 = vpop.f32.mrf.mxu0
    %v125 = vadd.f32 %v94, %v124
    %v126 = vpop.f32.mrf.mxu0
    %127 = vdwg.mxu0
    %v128 = vtanh.pop %v125
    %v129 = vpack.c.bf16 %v128, %v128
    %v130 = vld [vmem:[#allocation7] sm:$0xf]
    %v131 = vld [vmem:[#allocation7 + $0x4] sm:$0xf]
    %v132 = vld [vmem:[#allocation7 + $0x8] sm:$0xf]
    %v133 = vld [vmem:[#allocation7 + $0xc] sm:$0xf]
    %v134 = vld [vmem:[#allocation7 + $0x10] sm:$0xf]
    %v135 = vld [vmem:[#allocation7 + $0x14] sm:$0xf]
    %v136 = vld [vmem:[#allocation7 + $0x18] sm:$0xf]
    %v137 = vld [vmem:[#allocation7 + $0x1c] sm:$0xf]
    %v138 = vld [vmem:[#allocation7 + $0x20] sm:$0xf]
    %v139 = vld [vmem:[#allocation7 + $0x24] sm:$0xf]
    %v140 = vld [vmem:[#allocation7 + $0x28] sm:$0xf]
    %v141 = vld [vmem:[#allocation7 + $0x2c] sm:$0xf]
    %v142 = vld [vmem:[#allocation7 + $0x30] sm:$0xf]
    %v143 = vld [vmem:[#allocation7 + $0x34] sm:$0xf]
    %v144 = vld [vmem:[#allocation7 + $0x38] sm:$0xf]
    %v145 = vld [vmem:[#allocation7 + $0x3c] sm:$0xf]
    %v146 = vld [vmem:[#allocation8] sm:$0x1]
    %v148 = vperm.slane %v146, 0
    %v166 = vunpack.c.l.b16 %v130
    %v167 = vunpack.c.l.b16 %v131
    %v168 = vunpack.c.l.b16 %v132
    %v169 = vunpack.c.l.b16 %v133
    %v170 = vunpack.c.l.b16 %v134
    %v171 = vunpack.c.l.b16 %v135
    %v172 = vunpack.c.l.b16 %v136
    %v173 = vunpack.c.l.b16 %v137
    %v174 = vunpack.c.l.b16 %v138
    %v175 = vunpack.c.l.b16 %v139
    %v176 = vunpack.c.l.b16 %v140
    %v177 = vunpack.c.l.b16 %v141
    %v178 = vunpack.c.l.b16 %v142
    %v179 = vunpack.c.l.b16 %v143
    %v180 = vunpack.c.l.b16 %v144
    %v181 = vunpack.c.l.b16 %v145
    %v182 = vpack.c.b16 %v167, %v166
    %v183 = vpack.c.b16 %v169, %v168
    %v184 = vpack.c.b16 %v171, %v170
    %v185 = vpack.c.b16 %v173, %v172
    %v186 = vpack.c.b16 %v175, %v174
    %v187 = vpack.c.b16 %v177, %v176
    %v188 = vpack.c.b16 %v179, %v178
    %v189 = vpack.c.b16 %v181, %v180
    %198 = vmatpush.bf16.msra.mxu0 %v189
    %199 = vmatpush.bf16.msra.mxu0 %v188
    %200 = vmatpush.bf16.msra.mxu0 %v187
    %201 = vmatpush.bf16.msra.mxu0 %v186
    %202 = vmatpush.bf16.msra.mxu0 %v185
    %203 = vmatpush.bf16.msra.mxu0 %v184
    %204 = vmatpush.bf16.msra.mxu0 %v183
    %205 = vmatpush.bf16.msra.mxu0 %v182
    %206 = vmatmul.bf16.gmra.mxu0 %v129
    %v207 = vpop.f32.mrf.mxu0
    %v208 = vadd.f32 %v148, %v207
    %v209 = vpop.f32.mrf.mxu0
    %210 = vdwg.mxu0
    %v211 = vtanh.pop %v208
    %v212 = vpack.c.bf16 %v211, %v211
    %v213 = vld [vmem:[%s5] sm:$0xf]
    %v214 = vld [vmem:[%s6] sm:$0xff]
    %216 = vset.pattern.permute.xlu0 0
    %217 = vperm.xlu0 %216, %v214
    %v218 = vpop.permute.xlu0 %217
    %220 = vmatpush.bf16.xpose.msra.mxu0 0
    %221 = vmatpush.bf16.xpose.msra.mxu0 0
    %222 = vmatpush.bf16.xpose.msra.mxu0 0
    %223 = vmatpush.bf16.xpose.msra.mxu0 0
    %224 = vmatpush.bf16.xpose.msra.mxu0 0
    %225 = vmatpush.bf16.xpose.msra.mxu0 0
    %226 = vmatpush.bf16.xpose.msra.mxu0 0
    %227 = vmatpush.bf16.xpose.msra.mxu0 %v212
    %228 = vmatmul.bf16.gmra.mxu0 %v213
    %v229 = vpop.f32.mrf.mxu0
    %v230 = vadd.f32 %v218, %v229
    %v231 = vpop.f32.mrf.mxu0
    %232 = vdwg.mxu0
    %vm233 = vcmask 64512
    %234 = vst.msk [vmem:[#allocation10] sm:$0xff] %vm233, %v230
    // Predicated region
    $region46: #{tpu_custom_call.1} parent=1 // pred_check
      _
    $region47: #{tpu_custom_call.1} parent=1 // pred_check_branch
      %236 = sbr.rel (0) target = $region49
    $region48: #{tpu_custom_call.1} parent=1 // pred_region
      %238 = vsyncadd [#allocation4], 0
      %s240 = sshll.u32 [#allocation10], 4
      %s241 = int_to_ptr.vmem [resolvable:$true] %s240
      %s242 = sshll.u32 %s7, 4
      %s243 = int_to_ptr.hbm [resolvable:$true] %s242
      %245 = dma.vmem_to_hbm [thread:$0]  %s241, 128, %s243, [#allocation4]
    $region49: #{tpu_custom_call.1} parent=1 // pred_fallthru
      _
    // Predicated region
    $region50: #{tpu_custom_call.1} parent=1 // pred_check
      _
    $region51: #{tpu_custom_call.1} parent=1 // pred_check_branch
      %247 = sbr.rel (0) target = $region53
    $region52: #{tpu_custom_call.1} parent=1 // pred_region
      %249 = dma.done [#allocation4], 128
    $region53: #{tpu_custom_call.1} parent=1 // pred_fallthru
      _
    %250 = vsyncpa [#allocation3], 1
    %251 = vsyncpa [#allocation6], 1
    %252 = vsyncpa [#allocation9], 1
    %253 = vsyncpa [#allocation4], 1

</llo_original>
